<compile_context>
chip_gen: v6e
topology: v6e:2x2x1
jax: 0.10.0
libtpu: 0.0.40
codegen_flags: <defaults>
</compile_context>

<pallas_src>
import jax
import jax.numpy as jnp
from jax.experimental import pallas as pl
from jax.experimental.pallas import tpu as pltpu

# Module hyper-parameters (match the PyTorch module __init__)
K = 3              # number of mixture components
P = 4              # x feature dim (self.p)
D = 8              # theta feature dim (self.d)
HIDDEN = [32, 32]  # hidden_dimensions
TB = 512           # batch columns (lanes) per grid step; multiple of 256


def _cond_loc_scale_kernel(x_ref, theta_ref,
                           w0_ref, b0_ref, w1_ref, b1_ref,
                           wm_ref, bm_ref, ws_ref, bs_ref,
                           o_ref):
    """Fused MLP (Linear->Tanh->Linear->Tanh->Linear) + (x - m) * exp(-log_s).

    Everything is feature-major: features on sublanes, batch on lanes.
      theta_ref: (D, TB)   x_ref: (P, TB)
      w0: (H0, D)  b0: (H0, 1)   w1: (H1, H0)  b1: (H1, 1)
      wm/ws: (K*P, H1)  bm/bs: (K*P, 1)   o_ref: (K*P, TB)
    """
    h = jnp.tanh(jnp.dot(w0_ref[...], theta_ref[...],
                         preferred_element_type=jnp.float32) + b0_ref[...])
    h = jnp.tanh(jnp.dot(w1_ref[...], h,
                         preferred_element_type=jnp.float32) + b1_ref[...])
    m = jnp.dot(wm_ref[...], h,
                preferred_element_type=jnp.float32) + bm_ref[...]        # (K*P, TB)
    log_s = jnp.dot(ws_ref[...], h,
                    preferred_element_type=jnp.float32) + bs_ref[...]    # (K*P, TB)

    # Broadcast x over the K mixture components along the sublane axis:
    # row k*P + p of x_t is x[p].
    x_t = jnp.tile(x_ref[...], (K, 1))                                   # (K*P, TB)
    o_ref[...] = ((x_t - m) * jnp.exp(-log_s)).astype(o_ref.dtype)


def _round_up(n, m):
    return (n + m - 1) // m * m


def _prepare_kernel_params(params):
    """Transpose nn.Linear-style (in, out)/(1, out) params to feature-major and
    split the last layer into location / log-scale halves (host-side column
    permutation -> no in-kernel slicing or concatenation)."""
    w0, b0, w1, b1, w2, b2 = params
    perm_m = jnp.asarray([k * 2 * P + p for k in range(K) for p in range(P)])
    perm_s = jnp.asarray([k * 2 * P + P + p for k in range(K) for p in range(P)])
    return (
        w0.T, b0.T,                            # (H0, D),   (H0, 1)
        w1.T, b1.T,                            # (H1, H0),  (H1, 1)
        w2[:, perm_m].T, b2[:, perm_m].T,      # (K*P, H1), (K*P, 1)  -> m
        w2[:, perm_s].T, b2[:, perm_s].T,      # (K*P, H1), (K*P, 1)  -> log_s
    )


def conditional_location_scale_forward(x, theta, params, *, tb=TB):
    """x: [..., P], theta: [..., D]  ->  [..., K, P]"""
    assert x.shape[:-1] == theta.shape[:-1]
    batch = x.shape[:-1]
    N = 1
    for b in batch:
        N *= b

    n_pad = _round_up(max(N, 1), tb)

    # Feature-major (lane-dense) layout; batch zero-padded up to n_pad lanes.
    xt = jnp.zeros((P, n_pad), jnp.float32).at[:, :N].set(
        x.reshape(N, P).astype(jnp.float32).T)
    tht = jnp.zeros((D, n_pad), jnp.float32).at[:, :N].set(
        theta.reshape(N, D).astype(jnp.float32).T)

    w0t, b0t, w1t, b1t, wmt, bmt, wst, bst = _prepare_kernel_params(params)

    def weight_spec(shape):
        return pl.BlockSpec(shape, lambda i: (0, 0))   # resident across grid

    out = pl.pallas_call(
        _cond_loc_scale_kernel,
        out_shape=jax.ShapeDtypeStruct((K * P, n_pad), jnp.float32),
        grid_spec=pltpu.PrefetchScalarGridSpec(
            num_scalar_prefetch=0,
            grid=(n_pad // tb,),
            in_specs=[
                pl.BlockSpec((P, tb), lambda i: (0, i)),   # x columns
                pl.BlockSpec((D, tb), lambda i: (0, i)),   # theta columns
                weight_spec(w0t.shape), weight_spec(b0t.shape),
                weight_spec(w1t.shape), weight_spec(b1t.shape),
                weight_spec(wmt.shape), weight_spec(bmt.shape),
                weight_spec(wst.shape), weight_spec(bst.shape),
            ],
            out_specs=pl.BlockSpec((K * P, tb), lambda i: (0, i)),
        ),
        compiler_params=pltpu.CompilerParams(
            dimension_semantics=("parallel",)),
    )(xt, tht, w0t, b0t, w1t, b1t, wmt, bmt, wst, bst)

    # (K*P, n_pad) -> drop padding -> [..., K, P]
    return out[:, :N].T.reshape(*batch, K, P)


def _init_params(key):
    """Deterministic synthetic weights matching nn.Linear shapes
    (stored transposed: (in, out) for row-vector matmul in the reference)."""
    dims = [D] + HIDDEN + [2 * K * P]
    params = []
    for h0, h1 in zip(dims[:-1], dims[1:]):
        key, kw, kb = jax.random.split(key, 3)
        scale = 1.0 / jnp.sqrt(h0)
        w = jax.random.uniform(kw, (h0, h1), jnp.float32, -scale, scale)
        b = jax.random.uniform(kb, (1, h1), jnp.float32, -scale, scale)
        params.extend([w, b])
    return tuple(params)


def _ref_forward(x, theta, params):
    """Pure-JAX reference replicating the PyTorch forward semantics."""
    w0, b0, w1, b1, w2, b2 = params
    h = jnp.tanh(theta @ w0 + b0[0])
    h = jnp.tanh(h @ w1 + b1[0])
    out = h @ w2 + b2[0]
    out = out.reshape(*theta.shape[:-1], K, 2 * P)
    m, log_s = out[..., :P], out[..., P:]
    X = x[..., None, :]                         # unsqueeze(-2).expand
    return (X - m) / jnp.exp(log_s)


if __name__ == "__main__":
    key = jax.random.PRNGKey(0)
    kparam, kx, kt = jax.random.split(key, 3)
    params = _init_params(kparam)

    # small example: batch dims (2, 8) -> 16 flattened rows (padded to TB)
    x = jax.random.normal(kx, (2, 8, P), jnp.float32)
    theta = jax.random.normal(kt, (2, 8, D), jnp.float32)
    out = jax.block_until_ready(
        conditional_location_scale_forward(x, theta, params))
    ref = _ref_forward(x, theta, params)
    assert out.shape == (2, 8, K, P)
    assert jnp.allclose(out, ref, atol=5e-5, rtol=5e-5), "mismatch vs reference"

    # second check: non-multiple batch exercising padding + a multi-step grid
    kx2, kt2 = jax.random.split(kx)
    x2 = jax.random.normal(kx2, (3, 400, P), jnp.float32)
    theta2 = jax.random.normal(kt2, (3, 400, D), jnp.float32)
    out2 = jax.block_until_ready(
        conditional_location_scale_forward(x2, theta2, params))
    ref2 = _ref_forward(x2, theta2, params)
    assert out2.shape == (3, 400, K, P)
    assert jnp.allclose(out2, ref2, atol=5e-5, rtol=5e-5), "mismatch vs reference (padded)"

    print("KERNEL_OK")
</pallas_src>

<mosaic_0001>
module attributes {stable_mosaic.version = 11 : i64} {
  func.func @_cond_loc_scale_kernel(%arg0: i32, %arg1: memref<4x512xf32, #tpu.memory_space<vmem>>, %arg2: memref<8x512xf32, #tpu.memory_space<vmem>>, %arg3: memref<32x8xf32, #tpu.memory_space<vmem>>, %arg4: memref<32x1xf32, #tpu.memory_space<vmem>>, %arg5: memref<32x32xf32, #tpu.memory_space<vmem>>, %arg6: memref<32x1xf32, #tpu.memory_space<vmem>>, %arg7: memref<12x32xf32, #tpu.memory_space<vmem>>, %arg8: memref<12x1xf32, #tpu.memory_space<vmem>>, %arg9: memref<12x32xf32, #tpu.memory_space<vmem>>, %arg10: memref<12x1xf32, #tpu.memory_space<vmem>>, %arg11: memref<12x512xf32, #tpu.memory_space<vmem>>) attributes {dimension_semantics = [#tpu.dimension_semantics<parallel>], iteration_bounds = array<i64: 1>, scalar_prefetch = 0 : i64, scratch_operands = 0 : i64, tpu.core_type = #tpu.core_type<tc>, window_params = [{transform_indices = @transform_0, window_bounds = array<i64: 4, 512>}, {transform_indices = @transform_1, window_bounds = array<i64: 8, 512>}, {pipeline_mode = #tpu.pipeline_mode<synchronous>, transform_indices = @transform_2, window_bounds = array<i64: 32, 8>}, {pipeline_mode = #tpu.pipeline_mode<synchronous>, transform_indices = @transform_3, window_bounds = array<i64: 32, 1>}, {pipeline_mode = #tpu.pipeline_mode<synchronous>, transform_indices = @transform_4, window_bounds = array<i64: 32, 32>}, {pipeline_mode = #tpu.pipeline_mode<synchronous>, transform_indices = @transform_5, window_bounds = array<i64: 32, 1>}, {pipeline_mode = #tpu.pipeline_mode<synchronous>, transform_indices = @transform_6, window_bounds = array<i64: 12, 32>}, {pipeline_mode = #tpu.pipeline_mode<synchronous>, transform_indices = @transform_7, window_bounds = array<i64: 12, 1>}, {pipeline_mode = #tpu.pipeline_mode<synchronous>, transform_indices = @transform_8, window_bounds = array<i64: 12, 32>}, {pipeline_mode = #tpu.pipeline_mode<synchronous>, transform_indices = @transform_9, window_bounds = array<i64: 12, 1>}, {transform_indices = @transform_10, window_bounds = array<i64: 12, 512>}]} {
    %c0 = arith.constant 0 : index
    %c0_0 = arith.constant 0 : index
    %0 = vector.load %arg3[%c0, %c0_0] : memref<32x8xf32, #tpu.memory_space<vmem>>, vector<32x8xf32>
    %c0_1 = arith.constant 0 : index
    %c0_2 = arith.constant 0 : index
    %1 = vector.load %arg2[%c0_1, %c0_2] : memref<8x512xf32, #tpu.memory_space<vmem>>, vector<8x512xf32>
    %cst = arith.constant dense<0.000000e+00> : vector<32x512xf32>
    %2 = tpu.matmul %0, %1, %cst {dimension_numbers = #tpu.dot_dimension_numbers<[1], [0], [0], [1], [0, 0, 1, 1], [], []>} : vector<32x8xf32>, vector<8x512xf32>, vector<32x512xf32> -> vector<32x512xf32>
    %c0_3 = arith.constant 0 : index
    %c0_4 = arith.constant 0 : index
    %3 = vector.load %arg4[%c0_3, %c0_4] : memref<32x1xf32, #tpu.memory_space<vmem>>, vector<32x1xf32>
    %4 = vector.broadcast %3 : vector<32x1xf32> to vector<32x512xf32>
    %5 = arith.addf %2, %4 : vector<32x512xf32>
    %6 = math.tanh %5 : vector<32x512xf32>
    %c0_5 = arith.constant 0 : index
    %c0_6 = arith.constant 0 : index
    %7 = vector.load %arg5[%c0_5, %c0_6] : memref<32x32xf32, #tpu.memory_space<vmem>>, vector<32x32xf32>
    %cst_7 = arith.constant dense<0.000000e+00> : vector<32x512xf32>
    %8 = tpu.matmul %7, %6, %cst_7 {dimension_numbers = #tpu.dot_dimension_numbers<[1], [0], [0], [1], [0, 0, 1, 1], [], []>} : vector<32x32xf32>, vector<32x512xf32>, vector<32x512xf32> -> vector<32x512xf32>
    %c0_8 = arith.constant 0 : index
    %c0_9 = arith.constant 0 : index
    %9 = vector.load %arg6[%c0_8, %c0_9] : memref<32x1xf32, #tpu.memory_space<vmem>>, vector<32x1xf32>
    %10 = vector.broadcast %9 : vector<32x1xf32> to vector<32x512xf32>
    %11 = arith.addf %8, %10 : vector<32x512xf32>
    %12 = math.tanh %11 : vector<32x512xf32>
    %c0_10 = arith.constant 0 : index
    %c0_11 = arith.constant 0 : index
    %13 = vector.load %arg7[%c0_10, %c0_11] : memref<12x32xf32, #tpu.memory_space<vmem>>, vector<12x32xf32>
    %cst_12 = arith.constant dense<0.000000e+00> : vector<12x512xf32>
    %14 = tpu.matmul %13, %12, %cst_12 {dimension_numbers = #tpu.dot_dimension_numbers<[1], [0], [0], [1], [0, 0, 1, 1], [], []>} : vector<12x32xf32>, vector<32x512xf32>, vector<12x512xf32> -> vector<12x512xf32>
    %c0_13 = arith.constant 0 : index
    %c0_14 = arith.constant 0 : index
    %15 = vector.load %arg8[%c0_13, %c0_14] : memref<12x1xf32, #tpu.memory_space<vmem>>, vector<12x1xf32>
    %16 = vector.broadcast %15 : vector<12x1xf32> to vector<12x512xf32>
    %17 = arith.addf %14, %16 : vector<12x512xf32>
    %c0_15 = arith.constant 0 : index
    %c0_16 = arith.constant 0 : index
    %18 = vector.load %arg9[%c0_15, %c0_16] : memref<12x32xf32, #tpu.memory_space<vmem>>, vector<12x32xf32>
    %cst_17 = arith.constant dense<0.000000e+00> : vector<12x512xf32>
    %19 = tpu.matmul %18, %12, %cst_17 {dimension_numbers = #tpu.dot_dimension_numbers<[1], [0], [0], [1], [0, 0, 1, 1], [], []>} : vector<12x32xf32>, vector<32x512xf32>, vector<12x512xf32> -> vector<12x512xf32>
    %c0_18 = arith.constant 0 : index
    %c0_19 = arith.constant 0 : index
    %20 = vector.load %arg10[%c0_18, %c0_19] : memref<12x1xf32, #tpu.memory_space<vmem>>, vector<12x1xf32>
    %21 = vector.broadcast %20 : vector<12x1xf32> to vector<12x512xf32>
    %22 = arith.addf %19, %21 : vector<12x512xf32>
    %c0_20 = arith.constant 0 : index
    %c0_21 = arith.constant 0 : index
    %23 = vector.load %arg1[%c0_20, %c0_21] : memref<4x512xf32, #tpu.memory_space<vmem>>, vector<4x512xf32>
    %24 = tpu.concatenate %23, %23, %23 in 0 : vector<4x512xf32>, vector<4x512xf32>, vector<4x512xf32> -> vector<12x512xf32>
    %25 = arith.subf %24, %17 : vector<12x512xf32>
    %cst_22 = arith.constant 0.000000e+00 : f32
    %26 = vector.broadcast %cst_22 : f32 to vector<12x512xf32>
    %27 = arith.subf %26, %22 : vector<12x512xf32>
    %28 = math.exp %27 : vector<12x512xf32>
    %29 = arith.mulf %25, %28 : vector<12x512xf32>
    %c0_23 = arith.constant 0 : index
    %c0_24 = arith.constant 0 : index
    %30 = vector.load %arg11[%c0_23, %c0_24] : memref<12x512xf32, #tpu.memory_space<vmem>>, vector<12x512xf32>
    tpu.vector_store %arg11[%c0_23, %c0_24], %29 {strides = array<i32>} : memref<12x512xf32, #tpu.memory_space<vmem>>, vector<12x512xf32>,
    return
  }
  func.func @transform_0(%arg0: i32) -> (i32, i32) {
    %c0_i32 = arith.constant 0 : i32
    %c0_i32_0 = arith.constant 0 : i32
    return %c0_i32, %arg0 : i32, i32
  }
  func.func @transform_1(%arg0: i32) -> (i32, i32) {
    %c0_i32 = arith.constant 0 : i32
    %c0_i32_0 = arith.constant 0 : i32
    return %c0_i32, %arg0 : i32, i32
  }
  func.func @transform_2(%arg0: i32) -> (i32, i32) {
    %c0_i32 = arith.constant 0 : i32
    %c0_i32_0 = arith.constant 0 : i32
    %c0_i32_1 = arith.constant 0 : i32
    return %c0_i32, %c0_i32_0 : i32, i32
  }
  func.func @transform_3(%arg0: i32) -> (i32, i32) {
    %c0_i32 = arith.constant 0 : i32
    %c0_i32_0 = arith.constant 0 : i32
    %c0_i32_1 = arith.constant 0 : i32
    return %c0_i32, %c0_i32_0 : i32, i32
  }
  func.func @transform_4(%arg0: i32) -> (i32, i32) {
    %c0_i32 = arith.constant 0 : i32
    %c0_i32_0 = arith.constant 0 : i32
    %c0_i32_1 = arith.constant 0 : i32
    return %c0_i32, %c0_i32_0 : i32, i32
  }
  func.func @transform_5(%arg0: i32) -> (i32, i32) {
    %c0_i32 = arith.constant 0 : i32
    %c0_i32_0 = arith.constant 0 : i32
    %c0_i32_1 = arith.constant 0 : i32
    return %c0_i32, %c0_i32_0 : i32, i32
  }
  func.func @transform_6(%arg0: i32) -> (i32, i32) {
    %c0_i32 = arith.constant 0 : i32
    %c0_i32_0 = arith.constant 0 : i32
    %c0_i32_1 = arith.constant 0 : i32
    return %c0_i32, %c0_i32_0 : i32, i32
  }
  func.func @transform_7(%arg0: i32) -> (i32, i32) {
    %c0_i32 = arith.constant 0 : i32
    %c0_i32_0 = arith.constant 0 : i32
    %c0_i32_1 = arith.constant 0 : i32
    return %c0_i32, %c0_i32_0 : i32, i32
  }
  func.func @transform_8(%arg0: i32) -> (i32, i32) {
    %c0_i32 = arith.constant 0 : i32
    %c0_i32_0 = arith.constant 0 : i32
    %c0_i32_1 = arith.constant 0 : i32
    return %c0_i32, %c0_i32_0 : i32, i32
  }
  func.func @transform_9(%arg0: i32) -> (i32, i32) {
    %c0_i32 = arith.constant 0 : i32
    %c0_i32_0 = arith.constant 0 : i32
    %c0_i32_1 = arith.constant 0 : i32
    return %c0_i32, %c0_i32_0 : i32, i32
  }
  func.func @transform_10(%arg0: i32) -> (i32, i32) {
    %c0_i32 = arith.constant 0 : i32
    %c0_i32_0 = arith.constant 0 : i32
    return %c0_i32, %arg0 : i32, i32
  }
}

</mosaic_0001>

<llo_original>
// kernel: tpu_custom_call.1
$region0: #{tpu_custom_call.1}
  #allocation0 [shape = 'u32[]', space=smem, size = 0x4, offset = 0x4, fixed_abs, tag = 'smem constant byte address 0x4 - core index']
  #allocation1 [shape = 'u32[144,128]{1,0:T(1,128)}', space=vmem, size = 0x12000, scoped, tag = 'internal scratch']
  %s0 = inlined_call_operand.vmem [shape: f32[4,512], index: 0, kind: input, shape index: {}]
  %s1 = inlined_call_operand.vmem [shape: f32[8,512], index: 1, kind: input, shape index: {}]
  %s2 = inlined_call_operand.vmem [shape: f32[32,8], index: 2, kind: input, shape index: {}]
  %s3 = inlined_call_operand.vmem [shape: f32[32,1], index: 3, kind: input, shape index: {}]
  %s4 = inlined_call_operand.vmem [shape: f32[32,32], index: 4, kind: input, shape index: {}]
  %s5 = inlined_call_operand.vmem [shape: f32[32,1], index: 5, kind: input, shape index: {}]
  %s6 = inlined_call_operand.vmem [shape: f32[12,32], index: 6, kind: input, shape index: {}]
  %s7 = inlined_call_operand.vmem [shape: f32[12,1], index: 7, kind: input, shape index: {}]
  %s8 = inlined_call_operand.vmem [shape: f32[12,32], index: 8, kind: input, shape index: {}]
  %s9 = inlined_call_operand.vmem [shape: f32[12,1], index: 9, kind: input, shape index: {}]
  %s10 = inlined_call_operand.hbm [shape: f32[12,512], index: 10, kind: output, shape index: {}]
  %s11 = sld [smem:[#allocation0]]
  $region50: #{tpu_custom_call.1} parent=0
    _
  %s13 = ssub.s32 1, %s11
  %s14 = scalar_select 0, %s13, %s11
  $region1: #{tpu_custom_call.1} parent=0
    #allocation2 [shape = 'u8[32768]{0}', space=vmem, size = 0x8000, scoped, tag = 'output window, operand 0, single buffered']
    #allocation3 [shape = 's32[1]{0}', space=sflag, size = 0x4, scoped, tag = 'scoped memory for tpu_custom_call.1']
    %15 = vsyncpa [#allocation3], 0
    // Predicated region
    $region2: #{tpu_custom_call.1} parent=1 // pred_check
      _
    $region3: #{tpu_custom_call.1} parent=1 // pred_check_branch
      %17 = sbr.rel (0) target = $region5
    $region4: #{tpu_custom_call.1} parent=1 // pred_region
      _
    $region5: #{tpu_custom_call.1} parent=1 // pred_fallthru
      _
    // Predicated region
    $region6: #{tpu_custom_call.1} parent=1 // pred_check
      _
    $region7: #{tpu_custom_call.1} parent=1 // pred_check_branch
      %19 = sbr.rel (0) target = $region9
    $region8: #{tpu_custom_call.1} parent=1 // pred_region
      _
    $region9: #{tpu_custom_call.1} parent=1 // pred_fallthru
      _
    // Predicated region
    $region10: #{tpu_custom_call.1} parent=1 // pred_check
      _
    $region11: #{tpu_custom_call.1} parent=1 // pred_check_branch
      %21 = sbr.rel (0) target = $region13
    $region12: #{tpu_custom_call.1} parent=1 // pred_region
      _
    $region13: #{tpu_custom_call.1} parent=1 // pred_fallthru
      _
    // Predicated region
    $region14: #{tpu_custom_call.1} parent=1 // pred_check
      _
    $region15: #{tpu_custom_call.1} parent=1 // pred_check_branch
      %23 = sbr.rel (0) target = $region17
    $region16: #{tpu_custom_call.1} parent=1 // pred_region
      _
    $region17: #{tpu_custom_call.1} parent=1 // pred_fallthru
      _
    // Predicated region
    $region18: #{tpu_custom_call.1} parent=1 // pred_check
      _
    $region19: #{tpu_custom_call.1} parent=1 // pred_check_branch
      %25 = sbr.rel (0) target = $region21
    $region20: #{tpu_custom_call.1} parent=1 // pred_region
      _
    $region21: #{tpu_custom_call.1} parent=1 // pred_fallthru
      _
    // Predicated region
    $region22: #{tpu_custom_call.1} parent=1 // pred_check
      _
    $region23: #{tpu_custom_call.1} parent=1 // pred_check_branch
      %27 = sbr.rel (0) target = $region25
    $region24: #{tpu_custom_call.1} parent=1 // pred_region
      _
    $region25: #{tpu_custom_call.1} parent=1 // pred_fallthru
      _
    // Predicated region
    $region26: #{tpu_custom_call.1} parent=1 // pred_check
      _
    $region27: #{tpu_custom_call.1} parent=1 // pred_check_branch
      %29 = sbr.rel (0) target = $region29
    $region28: #{tpu_custom_call.1} parent=1 // pred_region
      _
    $region29: #{tpu_custom_call.1} parent=1 // pred_fallthru
      _
    // Predicated region
    $region30: #{tpu_custom_call.1} parent=1 // pred_check
      _
    $region31: #{tpu_custom_call.1} parent=1 // pred_check_branch
      %31 = sbr.rel (0) target = $region33
    $region32: #{tpu_custom_call.1} parent=1 // pred_region
      _
    $region33: #{tpu_custom_call.1} parent=1 // pred_fallthru
      _
    // Predicated region
    $region34: #{tpu_custom_call.1} parent=1 // pred_check
      _
    $region35: #{tpu_custom_call.1} parent=1 // pred_check_branch
      %33 = sbr.rel (0) target = $region37
    $region36: #{tpu_custom_call.1} parent=1 // pred_region
      _
    $region37: #{tpu_custom_call.1} parent=1 // pred_fallthru
      _
    // Predicated region
    $region38: #{tpu_custom_call.1} parent=1 // pred_check
      _
    $region39: #{tpu_custom_call.1} parent=1 // pred_check_branch
      %35 = sbr.rel (0) target = $region41
    $region40: #{tpu_custom_call.1} parent=1 // pred_region
      _
    $region41: #{tpu_custom_call.1} parent=1 // pred_fallthru
      _
    %v36 = vld [vmem:[%s2] sm:$0xff]
    %v37 = vld [vmem:[%s2 + $0x8] sm:$0xff]
    %v38 = vld [vmem:[%s2 + $0x10] sm:$0xff]
    %v39 = vld [vmem:[%s2 + $0x18] sm:$0xff]
    %v40 = vld [vmem:[%s1] sm:$0xff]
    %v41 = vld [vmem:[%s1 + $0x8] sm:$0xff]
    %v42 = vld [vmem:[%s1 + $0x10] sm:$0xff]
    %v43 = vld [vmem:[%s1 + $0x18] sm:$0xff]
    %v44 = vld [vmem:[%s3] sm:$0xff]
    %v45 = vld [vmem:[%s3 + $0x8] sm:$0xff]
    %v46 = vld [vmem:[%s3 + $0x10] sm:$0xff]
    %v47 = vld [vmem:[%s3 + $0x18] sm:$0xff]
    %49 = vset.pattern.permute.xlu0 0
    %50 = vperm.xlu0 %49, %v44
    %v51 = vpop.permute.xlu0 %50
    %54 = vset.pattern.permute.xlu0 0
    %55 = vperm.xlu0 %54, %v45
    %v56 = vpop.permute.xlu0 %55
    %59 = vset.pattern.permute.xlu0 0
    %60 = vperm.xlu0 %59, %v46
    %v61 = vpop.permute.xlu0 %60
    %64 = vset.pattern.permute.xlu0 0
    %65 = vperm.xlu0 %64, %v47
    %v66 = vpop.permute.xlu0 %65
    %vm68 = vcmask 64512
    %v70 = vsel %vm68, %v36, 0
    %v73 = vsel %vm68, %v37, 0
    %v76 = vsel %vm68, %v38, 0
    %v79 = vsel %vm68, %v39, 0
    %81 = vmatprep.subr.mxu0 0.0
    %82 = vmatpush1.msra.mxu0 0.0
    %83 = vmatprep.subr.mxu0 0.0
    %84 = vmatpush1.msra.mxu0 0.0
    %85 = vmatprep.subr.mxu0 0.0
    %86 = vmatpush1.msra.mxu0 0.0
    %87 = vmatprep.subr.mxu0 0.0
    %88 = vmatpush1.msra.mxu0 0.0
    %89 = vmatprep.subr.mxu0 0.0
    %90 = vmatpush1.msra.mxu0 0.0
    %91 = vmatprep.subr.mxu0 0.0
    %92 = vmatpush1.msra.mxu0 0.0
    %93 = vmatprep.subr.mxu0 0.0
    %94 = vmatpush1.msra.mxu0 0.0
    %95 = vmatprep.subr.mxu0 0.0
    %96 = vmatpush1.msra.mxu0 0.0
    %97 = vmatprep.subr.mxu0 0.0
    %98 = vmatpush1.msra.mxu0 0.0
    %99 = vmatprep.subr.mxu0 0.0
    %100 = vmatpush1.msra.mxu0 0.0
    %101 = vmatprep.subr.mxu0 0.0
    %102 = vmatpush1.msra.mxu0 0.0
    %103 = vmatprep.subr.mxu0 0.0
    %104 = vmatpush1.msra.mxu0 0.0
    %105 = vmatprep.subr.mxu0 0.0
    %106 = vmatpush1.msra.mxu0 0.0
    %107 = vmatprep.subr.mxu0 0.0
    %108 = vmatpush1.msra.mxu0 0.0
    %109 = vmatprep.subr.mxu0 0.0
    %110 = vmatpush1.msra.mxu0 0.0
    %111 = vmatprep.subr.mxu0 %v41
    %112 = vmatpush1.msra.mxu0 %v40
    %113 = vmatprep.subr.mxu0 0.0
    %114 = vmatpush2.msra.mxu0 0.0
    %115 = vmatprep.subr.mxu0 0.0
    %116 = vmatpush2.msra.mxu0 0.0
    %117 = vmatprep.subr.mxu0 0.0
    %118 = vmatpush2.msra.mxu0 0.0
    %119 = vmatprep.subr.mxu0 0.0
    %120 = vmatpush2.msra.mxu0 0.0
    %121 = vmatprep.subr.mxu0 0.0
    %122 = vmatpush2.msra.mxu0 0.0
    %123 = vmatprep.subr.mxu0 0.0
    %124 = vmatpush2.msra.mxu0 0.0
    %125 = vmatprep.subr.mxu0 0.0
    %126 = vmatpush2.msra.mxu0 0.0
    %127 = vmatprep.subr.mxu0 0.0
    %128 = vmatpush2.msra.mxu0 0.0
    %129 = vmatprep.subr.mxu0 0.0
    %130 = vmatpush2.msra.mxu0 0.0
    %131 = vmatprep.subr.mxu0 0.0
    %132 = vmatpush2.msra.mxu0 0.0
    %133 = vmatprep.subr.mxu0 0.0
    %134 = vmatpush2.msra.mxu0 0.0
    %135 = vmatprep.subr.mxu0 0.0
    %136 = vmatpush2.msra.mxu0 0.0
    %137 = vmatprep.subr.mxu0 0.0
    %138 = vmatpush2.msra.mxu0 0.0
    %139 = vmatprep.subr.mxu0 0.0
    %140 = vmatpush2.msra.mxu0 0.0
    %141 = vmatprep.subr.mxu0 0.0
    %142 = vmatpush2.msra.mxu0 0.0
    %143 = vmatprep.subr.mxu0 0.0
    %144 = vmatpush2.msra.mxu0 0.0
    %145 = vmatprep.mubr.f32.mxu0 0.0
    %146 = vmatmul.mubr.f32.gmra.mxu0 %v70
    %v147 = vpop.f32.mrf.mxu0
    %v148 = vadd.f32 %v51, %v147
    %v149 = vpop.f32.mrf.mxu0
    %v150 = vadd.f32 %v51, %v149
    %151 = vmatprep.mubr.f32.mxu0 0.0
    %152 = vmatmul.mubr.f32.gmra.mxu0 %v73
    %v153 = vpop.f32.mrf.mxu0
    %v154 = vadd.f32 %v56, %v153
    %v155 = vpop.f32.mrf.mxu0
    %v156 = vadd.f32 %v56, %v155
    %157 = vmatprep.mubr.f32.mxu0 0.0
    %158 = vmatmul.mubr.f32.gmra.mxu0 %v76
    %v159 = vpop.f32.mrf.mxu0
    %v160 = vadd.f32 %v61, %v159
    %v161 = vpop.f32.mrf.mxu0
    %v162 = vadd.f32 %v61, %v161
    %163 = vmatprep.mubr.f32.mxu0 0.0
    %164 = vmatmul.mubr.f32.gmra.mxu0 %v79
    %v165 = vpop.f32.mrf.mxu0
    %v166 = vadd.f32 %v66, %v165
    %v167 = vpop.f32.mrf.mxu0
    %v168 = vadd.f32 %v66, %v167
    %169 = vdwg.mxu0
    %170 = vmatprep.subr.mxu0 0.0
    %171 = vmatpush1.msra.mxu0 0.0
    %172 = vmatprep.subr.mxu0 0.0
    %173 = vmatpush1.msra.mxu0 0.0
    %174 = vmatprep.subr.mxu0 0.0
    %175 = vmatpush1.msra.mxu0 0.0
    %176 = vmatprep.subr.mxu0 0.0
    %177 = vmatpush1.msra.mxu0 0.0
    %178 = vmatprep.subr.mxu0 0.0
    %179 = vmatpush1.msra.mxu0 0.0
    %180 = vmatprep.subr.mxu0 0.0
    %181 = vmatpush1.msra.mxu0 0.0
    %182 = vmatprep.subr.mxu0 0.0
    %183 = vmatpush1.msra.mxu0 0.0
    %184 = vmatprep.subr.mxu0 0.0
    %185 = vmatpush1.msra.mxu0 0.0
    %186 = vmatprep.subr.mxu0 0.0
    %187 = vmatpush1.msra.mxu0 0.0
    %188 = vmatprep.subr.mxu0 0.0
    %189 = vmatpush1.msra.mxu0 0.0
    %190 = vmatprep.subr.mxu0 0.0
    %191 = vmatpush1.msra.mxu0 0.0
    %192 = vmatprep.subr.mxu0 0.0
    %193 = vmatpush1.msra.mxu0 0.0
    %194 = vmatprep.subr.mxu0 0.0
    %195 = vmatpush1.msra.mxu0 0.0
    %196 = vmatprep.subr.mxu0 0.0
    %197 = vmatpush1.msra.mxu0 0.0
    %198 = vmatprep.subr.mxu0 0.0
    %199 = vmatpush1.msra.mxu0 0.0
    %200 = vmatprep.subr.mxu0 %v43
    %201 = vmatpush1.msra.mxu0 %v42
    %202 = vmatprep.subr.mxu0 0.0
    %203 = vmatpush2.msra.mxu0 0.0
    %204 = vmatprep.subr.mxu0 0.0
    %205 = vmatpush2.msra.mxu0 0.0
    %206 = vmatprep.subr.mxu0 0.0
    %207 = vmatpush2.msra.mxu0 0.0
    %208 = vmatprep.subr.mxu0 0.0
    %209 = vmatpush2.msra.mxu0 0.0
    %210 = vmatprep.subr.mxu0 0.0
    %211 = vmatpush2.msra.mxu0 0.0
    %212 = vmatprep.subr.mxu0 0.0
    %213 = vmatpush2.msra.mxu0 0.0
    %214 = vmatprep.subr.mxu0 0.0
    %215 = vmatpush2.msra.mxu0 0.0
    %216 = vmatprep.subr.mxu0 0.0
    %217 = vmatpush2.msra.mxu0 0.0
    %218 = vmatprep.subr.mxu0 0.0
    %219 = vmatpush2.msra.mxu0 0.0
    %220 = vmatprep.subr.mxu0 0.0
    %221 = vmatpush2.msra.mxu0 0.0
    %222 = vmatprep.subr.mxu0 0.0
    %223 = vmatpush2.msra.mxu0 0.0
    %224 = vmatprep.subr.mxu0 0.0
    %225 = vmatpush2.msra.mxu0 0.0
    %226 = vmatprep.subr.mxu0 0.0
    %227 = vmatpush2.msra.mxu0 0.0
    %228 = vmatprep.subr.mxu0 0.0
    %229 = vmatpush2.msra.mxu0 0.0
    %230 = vmatprep.subr.mxu0 0.0
    %231 = vmatpush2.msra.mxu0 0.0
    %232 = vmatprep.subr.mxu0 0.0
    %233 = vmatpush2.msra.mxu0 0.0
    %234 = vmatprep.mubr.f32.mxu0 0.0
    %235 = vmatmul.mubr.f32.gmra.mxu0 %v70
    %v236 = vpop.f32.mrf.mxu0
    %v237 = vadd.f32 %v51, %v236
    %v238 = vpop.f32.mrf.mxu0
    %v239 = vadd.f32 %v51, %v238
    %240 = vmatprep.mubr.f32.mxu0 0.0
    %241 = vmatmul.mubr.f32.gmra.mxu0 %v73
    %v242 = vpop.f32.mrf.mxu0
    %v243 = vadd.f32 %v56, %v242
    %v244 = vpop.f32.mrf.mxu0
    %v245 = vadd.f32 %v56, %v244
    %246 = vmatprep.mubr.f32.mxu0 0.0
    %247 = vmatmul.mubr.f32.gmra.mxu0 %v76
    %v248 = vpop.f32.mrf.mxu0
    %v249 = vadd.f32 %v61, %v248
    %v250 = vpop.f32.mrf.mxu0
    %v251 = vadd.f32 %v61, %v250
    %252 = vmatprep.mubr.f32.mxu0 0.0
    %253 = vmatmul.mubr.f32.gmra.mxu0 %v79
    %v254 = vpop.f32.mrf.mxu0
    %v255 = vadd.f32 %v66, %v254
    %v256 = vpop.f32.mrf.mxu0
    %v257 = vadd.f32 %v66, %v256
    %258 = vdwg.mxu0
    %v259 = vtanh.pop %v148
    %v260 = vtanh.pop %v150
    %v261 = vtanh.pop %v237
    %v262 = vtanh.pop %v239
    %v263 = vtanh.pop %v154
    %v264 = vtanh.pop %v156
    %v265 = vtanh.pop %v243
    %v266 = vtanh.pop %v245
    %v267 = vtanh.pop %v160
    %v268 = vtanh.pop %v162
    %v269 = vtanh.pop %v249
    %v270 = vtanh.pop %v251
    %v271 = vtanh.pop %v166
    %v272 = vtanh.pop %v168
    %v273 = vtanh.pop %v255
    %v274 = vtanh.pop %v257
    %v275 = vld [vmem:[%s4] sm:$0xff]
    %v276 = vld [vmem:[%s4 + $0x8] sm:$0xff]
    %v277 = vld [vmem:[%s4 + $0x10] sm:$0xff]
    %v278 = vld [vmem:[%s4 + $0x18] sm:$0xff]
    %v279 = vld [vmem:[%s5] sm:$0xff]
    %v280 = vld [vmem:[%s5 + $0x8] sm:$0xff]
    %v281 = vld [vmem:[%s5 + $0x10] sm:$0xff]
    %v282 = vld [vmem:[%s5 + $0x18] sm:$0xff]
    %284 = vset.pattern.permute.xlu0 0
    %285 = vperm.xlu0 %284, %v279
    %v286 = vpop.permute.xlu0 %285
    %289 = vset.pattern.permute.xlu0 0
    %290 = vperm.xlu0 %289, %v280
    %v291 = vpop.permute.xlu0 %290
    %294 = vset.pattern.permute.xlu0 0
    %295 = vperm.xlu0 %294, %v281
    %v296 = vpop.permute.xlu0 %295
    %299 = vset.pattern.permute.xlu0 0
    %300 = vperm.xlu0 %299, %v282
    %v301 = vpop.permute.xlu0 %300
    %vm303 = vcmask 261120
    %v305 = vsel %vm303, %v275, 0
    %v308 = vsel %vm303, %v276, 0
    %v311 = vsel %vm303, %v277, 0
    %v314 = vsel %vm303, %v278, 0
    %316 = vmatprep.subr.mxu0 0.0
    %317 = vmatpush1.msra.mxu0 0.0
    %318 = vmatprep.subr.mxu0 0.0
    %319 = vmatpush1.msra.mxu0 0.0
    %320 = vmatprep.subr.mxu0 0.0
    %321 = vmatpush1.msra.mxu0 0.0
    %322 = vmatprep.subr.mxu0 0.0
    %323 = vmatpush1.msra.mxu0 0.0
    %324 = vmatprep.subr.mxu0 0.0
    %325 = vmatpush1.msra.mxu0 0.0
    %326 = vmatprep.subr.mxu0 0.0
    %327 = vmatpush1.msra.mxu0 0.0
    %328 = vmatprep.subr.mxu0 0.0
    %329 = vmatpush1.msra.mxu0 0.0
    %330 = vmatprep.subr.mxu0 0.0
    %331 = vmatpush1.msra.mxu0 0.0
    %332 = vmatprep.subr.mxu0 0.0
    %333 = vmatpush1.msra.mxu0 0.0
    %334 = vmatprep.subr.mxu0 0.0
    %335 = vmatpush1.msra.mxu0 0.0
    %336 = vmatprep.subr.mxu0 0.0
    %337 = vmatpush1.msra.mxu0 0.0
    %338 = vmatprep.subr.mxu0 0.0
    %339 = vmatpush1.msra.mxu0 0.0
    %340 = vmatprep.subr.mxu0 %v272
    %341 = vmatpush1.msra.mxu0 %v271
    %342 = vmatprep.subr.mxu0 %v268
    %343 = vmatpush1.msra.mxu0 %v267
    %344 = vmatprep.subr.mxu0 %v264
    %345 = vmatpush1.msra.mxu0 %v263
    %346 = vmatprep.subr.mxu0 %v260
    %347 = vmatpush1.msra.mxu0 %v259
    %348 = vmatprep.subr.mxu0 0.0
    %349 = vmatpush2.msra.mxu0 0.0
    %350 = vmatprep.subr.mxu0 0.0
    %351 = vmatpush2.msra.mxu0 0.0
    %352 = vmatprep.subr.mxu0 0.0
    %353 = vmatpush2.msra.mxu0 0.0
    %354 = vmatprep.subr.mxu0 0.0
    %355 = vmatpush2.msra.mxu0 0.0
    %356 = vmatprep.subr.mxu0 0.0
    %357 = vmatpush2.msra.mxu0 0.0
    %358 = vmatprep.subr.mxu0 0.0
    %359 = vmatpush2.msra.mxu0 0.0
    %360 = vmatprep.subr.mxu0 0.0
    %361 = vmatpush2.msra.mxu0 0.0
    %362 = vmatprep.subr.mxu0 0.0
    %363 = vmatpush2.msra.mxu0 0.0
    %364 = vmatprep.subr.mxu0 0.0
    %365 = vmatpush2.msra.mxu0 0.0
    %366 = vmatprep.subr.mxu0 0.0
    %367 = vmatpush2.msra.mxu0 0.0
    %368 = vmatprep.subr.mxu0 0.0
    %369 = vmatpush2.msra.mxu0 0.0
    %370 = vmatprep.subr.mxu0 0.0
    %371 = vmatpush2.msra.mxu0 0.0
    %372 = vmatprep.subr.mxu0 0.0
    %373 = vmatpush2.msra.mxu0 0.0
    %374 = vmatprep.subr.mxu0 0.0
    %375 = vmatpush2.msra.mxu0 0.0
    %376 = vmatprep.subr.mxu0 0.0
    %377 = vmatpush2.msra.mxu0 0.0
    %378 = vmatprep.subr.mxu0 0.0
    %379 = vmatpush2.msra.mxu0 0.0
    %380 = vmatprep.mubr.f32.mxu0 0.0
    %381 = vmatmul.mubr.f32.gmra.mxu0 %v305
    %v382 = vpop.f32.mrf.mxu0
    %v383 = vadd.f32 %v286, %v382
    %v384 = vpop.f32.mrf.mxu0
    %v385 = vadd.f32 %v286, %v384
    %386 = vmatprep.mubr.f32.mxu0 0.0
    %387 = vmatmul.mubr.f32.gmra.mxu0 %v308
    %v388 = vpop.f32.mrf.mxu0
    %v389 = vadd.f32 %v291, %v388
    %v390 = vpop.f32.mrf.mxu0
    %v391 = vadd.f32 %v291, %v390
    %392 = vmatprep.mubr.f32.mxu0 0.0
    %393 = vmatmul.mubr.f32.gmra.mxu0 %v311
    %v394 = vpop.f32.mrf.mxu0
    %v395 = vadd.f32 %v296, %v394
    %v396 = vpop.f32.mrf.mxu0
    %v397 = vadd.f32 %v296, %v396
    %398 = vmatprep.mubr.f32.mxu0 0.0
    %399 = vmatmul.mubr.f32.gmra.mxu0 %v314
    %v400 = vpop.f32.mrf.mxu0
    %v401 = vadd.f32 %v301, %v400
    %v402 = vpop.f32.mrf.mxu0
    %v403 = vadd.f32 %v301, %v402
    %404 = vdwg.mxu0
    %405 = vmatprep.subr.mxu0 0.0
    %406 = vmatpush1.msra.mxu0 0.0
    %407 = vmatprep.subr.mxu0 0.0
    %408 = vmatpush1.msra.mxu0 0.0
    %409 = vmatprep.subr.mxu0 0.0
    %410 = vmatpush1.msra.mxu0 0.0
    %411 = vmatprep.subr.mxu0 0.0
    %412 = vmatpush1.msra.mxu0 0.0
    %413 = vmatprep.subr.mxu0 0.0
    %414 = vmatpush1.msra.mxu0 0.0
    %415 = vmatprep.subr.mxu0 0.0
    %416 = vmatpush1.msra.mxu0 0.0
    %417 = vmatprep.subr.mxu0 0.0
    %418 = vmatpush1.msra.mxu0 0.0
    %419 = vmatprep.subr.mxu0 0.0
    %420 = vmatpush1.msra.mxu0 0.0
    %421 = vmatprep.subr.mxu0 0.0
    %422 = vmatpush1.msra.mxu0 0.0
    %423 = vmatprep.subr.mxu0 0.0
    %424 = vmatpush1.msra.mxu0 0.0
    %425 = vmatprep.subr.mxu0 0.0
    %426 = vmatpush1.msra.mxu0 0.0
    %427 = vmatprep.subr.mxu0 0.0
    %428 = vmatpush1.msra.mxu0 0.0
    %429 = vmatprep.subr.mxu0 %v274
    %430 = vmatpush1.msra.mxu0 %v273
    %431 = vmatprep.subr.mxu0 %v270
    %432 = vmatpush1.msra.mxu0 %v269
    %433 = vmatprep.subr.mxu0 %v266
    %434 = vmatpush1.msra.mxu0 %v265
    %435 = vmatprep.subr.mxu0 %v262
    %436 = vmatpush1.msra.mxu0 %v261
    %437 = vmatprep.subr.mxu0 0.0
    %438 = vmatpush2.msra.mxu0 0.0
    %439 = vmatprep.subr.mxu0 0.0
    %440 = vmatpush2.msra.mxu0 0.0
    %441 = vmatprep.subr.mxu0 0.0
    %442 = vmatpush2.msra.mxu0 0.0
    %443 = vmatprep.subr.mxu0 0.0
    %444 = vmatpush2.msra.mxu0 0.0
    %445 = vmatprep.subr.mxu0 0.0
    %446 = vmatpush2.msra.mxu0 0.0
    %447 = vmatprep.subr.mxu0 0.0
    %448 = vmatpush2.msra.mxu0 0.0
    %449 = vmatprep.subr.mxu0 0.0
    %450 = vmatpush2.msra.mxu0 0.0
    %451 = vmatprep.subr.mxu0 0.0
    %452 = vmatpush2.msra.mxu0 0.0
    %453 = vmatprep.subr.mxu0 0.0
    %454 = vmatpush2.msra.mxu0 0.0
    %455 = vmatprep.subr.mxu0 0.0
    %456 = vmatpush2.msra.mxu0 0.0
    %457 = vmatprep.subr.mxu0 0.0
    %458 = vmatpush2.msra.mxu0 0.0
    %459 = vmatprep.subr.mxu0 0.0
    %460 = vmatpush2.msra.mxu0 0.0
    %461 = vmatprep.subr.mxu0 0.0
    %462 = vmatpush2.msra.mxu0 0.0
    %463 = vmatprep.subr.mxu0 0.0
    %464 = vmatpush2.msra.mxu0 0.0
    %465 = vmatprep.subr.mxu0 0.0
    %466 = vmatpush2.msra.mxu0 0.0
    %467 = vmatprep.subr.mxu0 0.0
    %468 = vmatpush2.msra.mxu0 0.0
    %469 = vmatprep.mubr.f32.mxu0 0.0
    %470 = vmatmul.mubr.f32.gmra.mxu0 %v305
    %v471 = vpop.f32.mrf.mxu0
    %v472 = vadd.f32 %v286, %v471
    %v473 = vpop.f32.mrf.mxu0
    %v474 = vadd.f32 %v286, %v473
    %475 = vmatprep.mubr.f32.mxu0 0.0
    %476 = vmatmul.mubr.f32.gmra.mxu0 %v308
    %v477 = vpop.f32.mrf.mxu0
    %v478 = vadd.f32 %v291, %v477
    %v479 = vpop.f32.mrf.mxu0
    %v480 = vadd.f32 %v291, %v479
    %481 = vmatprep.mubr.f32.mxu0 0.0
    %482 = vmatmul.mubr.f32.gmra.mxu0 %v311
    %v483 = vpop.f32.mrf.mxu0
    %v484 = vadd.f32 %v296, %v483
    %v485 = vpop.f32.mrf.mxu0
    %v486 = vadd.f32 %v296, %v485
    %487 = vmatprep.mubr.f32.mxu0 0.0
    %488 = vmatmul.mubr.f32.gmra.mxu0 %v314
    %v489 = vpop.f32.mrf.mxu0
    %v490 = vadd.f32 %v301, %v489
    %v491 = vpop.f32.mrf.mxu0
    %v492 = vadd.f32 %v301, %v491
    %493 = vdwg.mxu0
    %v494 = vtanh.pop %v383
    %v495 = vtanh.pop %v385
    %v496 = vtanh.pop %v472
    %v497 = vtanh.pop %v474
    %v498 = vtanh.pop %v389
    %v499 = vtanh.pop %v391
    %v500 = vtanh.pop %v478
    %v501 = vtanh.pop %v480
    %v502 = vtanh.pop %v395
    %v503 = vtanh.pop %v397
    %v504 = vtanh.pop %v484
    %v505 = vtanh.pop %v486
    %v506 = vtanh.pop %v401
    %v507 = vtanh.pop %v403
    %v508 = vtanh.pop %v490
    %v509 = vtanh.pop %v492
    %v510 = vld [vmem:[%s6] sm:$0xff]
    %v511 = vld [vmem:[%s6 + $0x8] sm:$0xf]
    %v512 = vld [vmem:[%s7] sm:$0xff]
    %v513 = vld [vmem:[%s7 + $0x8] sm:$0xf]
    %515 = vset.pattern.permute.xlu0 0
    %516 = vperm.xlu0 %515, %v512
    %v517 = vpop.permute.xlu0 %516
    %520 = vset.pattern.permute.xlu0 0
    %521 = vperm.xlu0 %520, %v513
    %v522 = vpop.permute.xlu0 %521
    %v525 = vsel %vm303, %v510, 0
    %v528 = vsel %vm303, %v511, 0
    %530 = vmatprep.subr.mxu0 0.0
    %531 = vmatpush1.msra.mxu0 0.0
    %532 = vmatprep.subr.mxu0 0.0
    %533 = vmatpush1.msra.mxu0 0.0
    %534 = vmatprep.subr.mxu0 0.0
    %535 = vmatpush1.msra.mxu0 0.0
    %536 = vmatprep.subr.mxu0 0.0
    %537 = vmatpush1.msra.mxu0 0.0
    %538 = vmatprep.subr.mxu0 0.0
    %539 = vmatpush1.msra.mxu0 0.0
    %540 = vmatprep.subr.mxu0 0.0
    %541 = vmatpush1.msra.mxu0 0.0
    %542 = vmatprep.subr.mxu0 0.0
    %543 = vmatpush1.msra.mxu0 0.0
    %544 = vmatprep.subr.mxu0 0.0
    %545 = vmatpush1.msra.mxu0 0.0
    %546 = vmatprep.subr.mxu0 0.0
    %547 = vmatpush1.msra.mxu0 0.0
    %548 = vmatprep.subr.mxu0 0.0
    %549 = vmatpush1.msra.mxu0 0.0
    %550 = vmatprep.subr.mxu0 0.0
    %551 = vmatpush1.msra.mxu0 0.0
    %552 = vmatprep.subr.mxu0 0.0
    %553 = vmatpush1.msra.mxu0 0.0
    %554 = vmatprep.subr.mxu0 %v507
    %555 = vmatpush1.msra.mxu0 %v506
    %556 = vmatprep.subr.mxu0 %v503
    %557 = vmatpush1.msra.mxu0 %v502
    %558 = vmatprep.subr.mxu0 %v499
    %559 = vmatpush1.msra.mxu0 %v498
    %560 = vmatprep.subr.mxu0 %v495
    %561 = vmatpush1.msra.mxu0 %v494
    %562 = vmatprep.subr.mxu0 0.0
    %563 = vmatpush2.msra.mxu0 0.0
    %564 = vmatprep.subr.mxu0 0.0
    %565 = vmatpush2.msra.mxu0 0.0
    %566 = vmatprep.subr.mxu0 0.0
    %567 = vmatpush2.msra.mxu0 0.0
    %568 = vmatprep.subr.mxu0 0.0
    %569 = vmatpush2.msra.mxu0 0.0
    %570 = vmatprep.subr.mxu0 0.0
    %571 = vmatpush2.msra.mxu0 0.0
    %572 = vmatprep.subr.mxu0 0.0
    %573 = vmatpush2.msra.mxu0 0.0
    %574 = vmatprep.subr.mxu0 0.0
    %575 = vmatpush2.msra.mxu0 0.0
    %576 = vmatprep.subr.mxu0 0.0
    %577 = vmatpush2.msra.mxu0 0.0
    %578 = vmatprep.subr.mxu0 0.0
    %579 = vmatpush2.msra.mxu0 0.0
    %580 = vmatprep.subr.mxu0 0.0
    %581 = vmatpush2.msra.mxu0 0.0
    %582 = vmatprep.subr.mxu0 0.0
    %583 = vmatpush2.msra.mxu0 0.0
    %584 = vmatprep.subr.mxu0 0.0
    %585 = vmatpush2.msra.mxu0 0.0
    %586 = vmatprep.subr.mxu0 0.0
    %587 = vmatpush2.msra.mxu0 0.0
    %588 = vmatprep.subr.mxu0 0.0
    %589 = vmatpush2.msra.mxu0 0.0
    %590 = vmatprep.subr.mxu0 0.0
    %591 = vmatpush2.msra.mxu0 0.0
    %592 = vmatprep.subr.mxu0 0.0
    %593 = vmatpush2.msra.mxu0 0.0
    %594 = vmatprep.mubr.f32.mxu0 0.0
    %595 = vmatmul.mubr.f32.gmra.mxu0 %v525
    %v596 = vpop.f32.mrf.mxu0
    %v597 = vadd.f32 %v517, %v596
    %v598 = vpop.f32.mrf.mxu0
    %v599 = vadd.f32 %v517, %v598
    %600 = vmatprep.mubr.f32.mxu0 0.0
    %601 = vmatmul.mubr.f32.gmra.mxu0 %v528
    %v602 = vpop.f32.mrf.mxu0
    %v603 = vadd.f32 %v522, %v602
    %v604 = vpop.f32.mrf.mxu0
    %v605 = vadd.f32 %v522, %v604
    %606 = vdwg.mxu0
    %607 = vmatprep.subr.mxu0 0.0
    %608 = vmatpush1.msra.mxu0 0.0
    %609 = vmatprep.subr.mxu0 0.0
    %610 = vmatpush1.msra.mxu0 0.0
    %611 = vmatprep.subr.mxu0 0.0
    %612 = vmatpush1.msra.mxu0 0.0
    %613 = vmatprep.subr.mxu0 0.0
    %614 = vmatpush1.msra.mxu0 0.0
    %615 = vmatprep.subr.mxu0 0.0
    %616 = vmatpush1.msra.mxu0 0.0
    %617 = vmatprep.subr.mxu0 0.0
    %618 = vmatpush1.msra.mxu0 0.0
    %619 = vmatprep.subr.mxu0 0.0
    %620 = vmatpush1.msra.mxu0 0.0
    %621 = vmatprep.subr.mxu0 0.0
    %622 = vmatpush1.msra.mxu0 0.0
    %623 = vmatprep.subr.mxu0 0.0
    %624 = vmatpush1.msra.mxu0 0.0
    %625 = vmatprep.subr.mxu0 0.0
    %626 = vmatpush1.msra.mxu0 0.0
    %627 = vmatprep.subr.mxu0 0.0
    %628 = vmatpush1.msra.mxu0 0.0
    %629 = vmatprep.subr.mxu0 0.0
    %630 = vmatpush1.msra.mxu0 0.0
    %631 = vmatprep.subr.mxu0 %v509
    %632 = vmatpush1.msra.mxu0 %v508
    %633 = vmatprep.subr.mxu0 %v505
    %634 = vmatpush1.msra.mxu0 %v504
    %635 = vmatprep.subr.mxu0 %v501
    %636 = vmatpush1.msra.mxu0 %v500
    %637 = vmatprep.subr.mxu0 %v497
    %638 = vmatpush1.msra.mxu0 %v496
    %639 = vmatprep.subr.mxu0 0.0
    %640 = vmatpush2.msra.mxu0 0.0
    %641 = vmatprep.subr.mxu0 0.0
    %642 = vmatpush2.msra.mxu0 0.0
    %643 = vmatprep.subr.mxu0 0.0
    %644 = vmatpush2.msra.mxu0 0.0
    %645 = vmatprep.subr.mxu0 0.0
    %646 = vmatpush2.msra.mxu0 0.0
    %647 = vmatprep.subr.mxu0 0.0
    %648 = vmatpush2.msra.mxu0 0.0
    %649 = vmatprep.subr.mxu0 0.0
    %650 = vmatpush2.msra.mxu0 0.0
    %651 = vmatprep.subr.mxu0 0.0
    %652 = vmatpush2.msra.mxu0 0.0
    %653 = vmatprep.subr.mxu0 0.0
    %654 = vmatpush2.msra.mxu0 0.0
    %655 = vmatprep.subr.mxu0 0.0
    %656 = vmatpush2.msra.mxu0 0.0
    %657 = vmatprep.subr.mxu0 0.0
    %658 = vmatpush2.msra.mxu0 0.0
    %659 = vmatprep.subr.mxu0 0.0
    %660 = vmatpush2.msra.mxu0 0.0
    %661 = vmatprep.subr.mxu0 0.0
    %662 = vmatpush2.msra.mxu0 0.0
    %663 = vmatprep.subr.mxu0 0.0
    %664 = vmatpush2.msra.mxu0 0.0
    %665 = vmatprep.subr.mxu0 0.0
    %666 = vmatpush2.msra.mxu0 0.0
    %667 = vmatprep.subr.mxu0 0.0
    %668 = vmatpush2.msra.mxu0 0.0
    %669 = vmatprep.subr.mxu0 0.0
    %670 = vmatpush2.msra.mxu0 0.0
    %671 = vmatprep.mubr.f32.mxu0 0.0
    %672 = vmatmul.mubr.f32.gmra.mxu0 %v525
    %v673 = vpop.f32.mrf.mxu0
    %v674 = vadd.f32 %v517, %v673
    %v675 = vpop.f32.mrf.mxu0
    %v676 = vadd.f32 %v517, %v675
    %677 = vmatprep.mubr.f32.mxu0 0.0
    %678 = vmatmul.mubr.f32.gmra.mxu0 %v528
    %v679 = vpop.f32.mrf.mxu0
    %v680 = vadd.f32 %v522, %v679
    %v681 = vpop.f32.mrf.mxu0
    %v682 = vadd.f32 %v522, %v681
    %683 = vdwg.mxu0
    %v684 = vld [vmem:[%s8] sm:$0xff]
    %v685 = vld [vmem:[%s8 + $0x8] sm:$0xf]
    %v686 = vld [vmem:[%s9] sm:$0xff]
    %v687 = vld [vmem:[%s9 + $0x8] sm:$0xf]
    %689 = vset.pattern.permute.xlu0 0
    %690 = vperm.xlu0 %689, %v686
    %v691 = vpop.permute.xlu0 %690
    %694 = vset.pattern.permute.xlu0 0
    %695 = vperm.xlu0 %694, %v687
    %v696 = vpop.permute.xlu0 %695
    %v699 = vsel %vm303, %v684, 0
    %v702 = vsel %vm303, %v685, 0
    %704 = vmatprep.subr.mxu0 0.0
    %705 = vmatpush1.msra.mxu0 0.0
    %706 = vmatprep.subr.mxu0 0.0
    %707 = vmatpush1.msra.mxu0 0.0
    %708 = vmatprep.subr.mxu0 0.0
    %709 = vmatpush1.msra.mxu0 0.0
    %710 = vmatprep.subr.mxu0 0.0
    %711 = vmatpush1.msra.mxu0 0.0
    %712 = vmatprep.subr.mxu0 0.0
    %713 = vmatpush1.msra.mxu0 0.0
    %714 = vmatprep.subr.mxu0 0.0
    %715 = vmatpush1.msra.mxu0 0.0
    %716 = vmatprep.subr.mxu0 0.0
    %717 = vmatpush1.msra.mxu0 0.0
    %718 = vmatprep.subr.mxu0 0.0
    %719 = vmatpush1.msra.mxu0 0.0
    %720 = vmatprep.subr.mxu0 0.0
    %721 = vmatpush1.msra.mxu0 0.0
    %722 = vmatprep.subr.mxu0 0.0
    %723 = vmatpush1.msra.mxu0 0.0
    %724 = vmatprep.subr.mxu0 0.0
    %725 = vmatpush1.msra.mxu0 0.0
    %726 = vmatprep.subr.mxu0 0.0
    %727 = vmatpush1.msra.mxu0 0.0
    %728 = vmatprep.subr.mxu0 %v507
    %729 = vmatpush1.msra.mxu0 %v506
    %730 = vmatprep.subr.mxu0 %v503
    %731 = vmatpush1.msra.mxu0 %v502
    %732 = vmatprep.subr.mxu0 %v499
    %733 = vmatpush1.msra.mxu0 %v498
    %734 = vmatprep.subr.mxu0 %v495
    %735 = vmatpush1.msra.mxu0 %v494
    %736 = vmatprep.subr.mxu0 0.0
    %737 = vmatpush2.msra.mxu0 0.0
    %738 = vmatprep.subr.mxu0 0.0
    %739 = vmatpush2.msra.mxu0 0.0
    %740 = vmatprep.subr.mxu0 0.0
    %741 = vmatpush2.msra.mxu0 0.0
    %742 = vmatprep.subr.mxu0 0.0
    %743 = vmatpush2.msra.mxu0 0.0
    %744 = vmatprep.subr.mxu0 0.0
    %745 = vmatpush2.msra.mxu0 0.0
    %746 = vmatprep.subr.mxu0 0.0
    %747 = vmatpush2.msra.mxu0 0.0
    %748 = vmatprep.subr.mxu0 0.0
    %749 = vmatpush2.msra.mxu0 0.0
    %750 = vmatprep.subr.mxu0 0.0
    %751 = vmatpush2.msra.mxu0 0.0
    %752 = vmatprep.subr.mxu0 0.0
    %753 = vmatpush2.msra.mxu0 0.0
    %754 = vmatprep.subr.mxu0 0.0
    %755 = vmatpush2.msra.mxu0 0.0
    %756 = vmatprep.subr.mxu0 0.0
    %757 = vmatpush2.msra.mxu0 0.0
    %758 = vmatprep.subr.mxu0 0.0
    %759 = vmatpush2.msra.mxu0 0.0
    %760 = vmatprep.subr.mxu0 0.0
    %761 = vmatpush2.msra.mxu0 0.0
    %762 = vmatprep.subr.mxu0 0.0
    %763 = vmatpush2.msra.mxu0 0.0
    %764 = vmatprep.subr.mxu0 0.0
    %765 = vmatpush2.msra.mxu0 0.0
    %766 = vmatprep.subr.mxu0 0.0
    %767 = vmatpush2.msra.mxu0 0.0
    %768 = vmatprep.mubr.f32.mxu0 0.0
    %769 = vmatmul.mubr.f32.gmra.mxu0 %v699
    %v770 = vpop.f32.mrf.mxu0
    %v771 = vadd.f32 %v691, %v770
    %v772 = vpop.f32.mrf.mxu0
    %v773 = vadd.f32 %v691, %v772
    %774 = vmatprep.mubr.f32.mxu0 0.0
    %775 = vmatmul.mubr.f32.gmra.mxu0 %v702
    %v776 = vpop.f32.mrf.mxu0
    %v777 = vadd.f32 %v696, %v776
    %v778 = vpop.f32.mrf.mxu0
    %v779 = vadd.f32 %v696, %v778
    %780 = vdwg.mxu0
    %781 = vmatprep.subr.mxu0 0.0
    %782 = vmatpush1.msra.mxu0 0.0
    %783 = vmatprep.subr.mxu0 0.0
    %784 = vmatpush1.msra.mxu0 0.0
    %785 = vmatprep.subr.mxu0 0.0
    %786 = vmatpush1.msra.mxu0 0.0
    %787 = vmatprep.subr.mxu0 0.0
    %788 = vmatpush1.msra.mxu0 0.0
    %789 = vmatprep.subr.mxu0 0.0
    %790 = vmatpush1.msra.mxu0 0.0
    %791 = vmatprep.subr.mxu0 0.0
    %792 = vmatpush1.msra.mxu0 0.0
    %793 = vmatprep.subr.mxu0 0.0
    %794 = vmatpush1.msra.mxu0 0.0
    %795 = vmatprep.subr.mxu0 0.0
    %796 = vmatpush1.msra.mxu0 0.0
    %797 = vmatprep.subr.mxu0 0.0
    %798 = vmatpush1.msra.mxu0 0.0
    %799 = vmatprep.subr.mxu0 0.0
    %800 = vmatpush1.msra.mxu0 0.0
    %801 = vmatprep.subr.mxu0 0.0
    %802 = vmatpush1.msra.mxu0 0.0
    %803 = vmatprep.subr.mxu0 0.0
    %804 = vmatpush1.msra.mxu0 0.0
    %805 = vmatprep.subr.mxu0 %v509
    %806 = vmatpush1.msra.mxu0 %v508
    %807 = vmatprep.subr.mxu0 %v505
    %808 = vmatpush1.msra.mxu0 %v504
    %809 = vmatprep.subr.mxu0 %v501
    %810 = vmatpush1.msra.mxu0 %v500
    %811 = vmatprep.subr.mxu0 %v497
    %812 = vmatpush1.msra.mxu0 %v496
    %813 = vmatprep.subr.mxu0 0.0
    %814 = vmatpush2.msra.mxu0 0.0
    %815 = vmatprep.subr.mxu0 0.0
    %816 = vmatpush2.msra.mxu0 0.0
    %817 = vmatprep.subr.mxu0 0.0
    %818 = vmatpush2.msra.mxu0 0.0
    %819 = vmatprep.subr.mxu0 0.0
    %820 = vmatpush2.msra.mxu0 0.0
    %821 = vmatprep.subr.mxu0 0.0
    %822 = vmatpush2.msra.mxu0 0.0
    %823 = vmatprep.subr.mxu0 0.0
    %824 = vmatpush2.msra.mxu0 0.0
    %825 = vmatprep.subr.mxu0 0.0
    %826 = vmatpush2.msra.mxu0 0.0
    %827 = vmatprep.subr.mxu0 0.0
    %828 = vmatpush2.msra.mxu0 0.0
    %829 = vmatprep.subr.mxu0 0.0
    %830 = vmatpush2.msra.mxu0 0.0
    %831 = vmatprep.subr.mxu0 0.0
    %832 = vmatpush2.msra.mxu0 0.0
    %833 = vmatprep.subr.mxu0 0.0
    %834 = vmatpush2.msra.mxu0 0.0
    %835 = vmatprep.subr.mxu0 0.0
    %836 = vmatpush2.msra.mxu0 0.0
    %837 = vmatprep.subr.mxu0 0.0
    %838 = vmatpush2.msra.mxu0 0.0
    %839 = vmatprep.subr.mxu0 0.0
    %840 = vmatpush2.msra.mxu0 0.0
    %841 = vmatprep.subr.mxu0 0.0
    %842 = vmatpush2.msra.mxu0 0.0
    %843 = vmatprep.subr.mxu0 0.0
    %844 = vmatpush2.msra.mxu0 0.0
    %845 = vmatprep.mubr.f32.mxu0 0.0
    %846 = vmatmul.mubr.f32.gmra.mxu0 %v699
    %v847 = vpop.f32.mrf.mxu0
    %v848 = vadd.f32 %v691, %v847
    %v849 = vpop.f32.mrf.mxu0
    %v850 = vadd.f32 %v691, %v849
    %851 = vmatprep.mubr.f32.mxu0 0.0
    %852 = vmatmul.mubr.f32.gmra.mxu0 %v702
    %v853 = vpop.f32.mrf.mxu0
    %v854 = vadd.f32 %v696, %v853
    %v855 = vpop.f32.mrf.mxu0
    %v856 = vadd.f32 %v696, %v855
    %857 = vdwg.mxu0
    %v858 = vld [vmem:[%s0] sm:$0xff]
    %v859 = vld [vmem:[%s0 + $0x8] sm:$0xff]
    %v862 = vcombine.high %v858, %v858
    %v863 = vcombine.high %v859, %v859
    %v866 = vcombine.low %v858, %v858
    %v867 = vcombine.low %v859, %v859
    %vm870 = vcmask 1043456
    %v871 = vsel %vm870, %v858, %v866
    %v872 = vsel %vm870, %v862, %v858
    %v873 = vsel %vm870, %v859, %v867
    %v874 = vsel %vm870, %v863, %v859
    %v875 = vsub.f32 %v871, %v597
    %v876 = vsub.f32 %v872, %v599
    %v877 = vsub.f32 %v873, %v674
    %v878 = vsub.f32 %v874, %v676
    %v879 = vsub.f32 %v858, %v603
    %v880 = vsub.f32 %v862, %v605
    %v881 = vsub.f32 %v859, %v680
    %v882 = vsub.f32 %v863, %v682
    %v883 = vsub.f32 0.0, %v771
    %v884 = vsub.f32 0.0, %v773
    %v885 = vsub.f32 0.0, %v848
    %v886 = vsub.f32 0.0, %v850
    %v887 = vsub.f32 0.0, %v777
    %v888 = vsub.f32 0.0, %v779
    %v889 = vsub.f32 0.0, %v854
    %v890 = vsub.f32 0.0, %v856
    %v891 = vmul.f32 %v883, 1.442695
    %v892 = vpow.pop %v891
    %v893 = vmul.f32 %v884, 1.442695
    %v894 = vpow.pop %v893
    %v895 = vmul.f32 %v885, 1.442695
    %v896 = vpow.pop %v895
    %v897 = vmul.f32 %v886, 1.442695
    %v898 = vpow.pop %v897
    %v899 = vmul.f32 %v887, 1.442695
    %v900 = vpow.pop %v899
    %v901 = vmul.f32 %v888, 1.442695
    %v902 = vpow.pop %v901
    %v903 = vmul.f32 %v889, 1.442695
    %v904 = vpow.pop %v903
    %v905 = vmul.f32 %v890, 1.442695
    %v906 = vpow.pop %v905
    %v907 = vmul.f32 %v875, %v892
    %v908 = vmul.f32 %v876, %v894
    %v909 = vmul.f32 %v877, %v896
    %v910 = vmul.f32 %v878, %v898
    %v911 = vmul.f32 %v879, %v900
    %v912 = vmul.f32 %v880, %v902
    %v913 = vmul.f32 %v881, %v904
    %v914 = vmul.f32 %v882, %v906
    %915 = vst [vmem:[#allocation2] sm:$0xff] %v907
    %916 = vst [vmem:[#allocation2 + $0x8] sm:$0xff] %v908
    %917 = vst [vmem:[#allocation2 + $0x10] sm:$0xff] %v909
    %918 = vst [vmem:[#allocation2 + $0x18] sm:$0xff] %v910
    %919 = vst [vmem:[#allocation2 + $0x20] sm:$0xf] %v911
    %920 = vst [vmem:[#allocation2 + $0x28] sm:$0xf] %v912
    %921 = vst [vmem:[#allocation2 + $0x30] sm:$0xf] %v913
    %922 = vst [vmem:[#allocation2 + $0x38] sm:$0xf] %v914
    // Predicated region
    $region42: #{tpu_custom_call.1} parent=1 // pred_check
      _
    $region43: #{tpu_custom_call.1} parent=1 // pred_check_branch
      %924 = sbr.rel (0) target = $region45
    $region44: #{tpu_custom_call.1} parent=1 // pred_region
      %s926 = ssub.s32 1024, 1024
      %927 = vsyncadd [#allocation3], %s926
      %s928 = sshll.u32 [#allocation2], 4
      %s929 = int_to_ptr.vmem [resolvable:$true] %s928
      %934 = dma.vmem_to_hbm [thread:$0]  %s929, 1024, %s10, [#allocation3], 512, 512, 32
    $region45: #{tpu_custom_call.1} parent=1 // pred_fallthru
      _
    // Predicated region
    $region46: #{tpu_custom_call.1} parent=1 // pred_check
      _
    $region47: #{tpu_custom_call.1} parent=1 // pred_check_branch
      %936 = sbr.rel (0) target = $region49
    $region48: #{tpu_custom_call.1} parent=1 // pred_region
      %937 = dma.done [#allocation3], 1024
    $region49: #{tpu_custom_call.1} parent=1 // pred_fallthru
      _
    %938 = vsyncpa [#allocation3], 1

</llo_original>
